<compile_context>
chip_gen: v7x
topology: tpu7x:2x2x1
jax: 0.10.0
libtpu: 0.0.40
codegen_flags: <defaults>
</compile_context>

<pallas_src>
import functools

import jax
import jax.numpy as jnp
from jax.experimental import pallas as pl
from jax.experimental.pallas import tpu as pltpu


def _triplet_kernel(margins_ref, a_ref, p_ref, n_ref,
                    loss_ref, dpos_ref, dneg_ref,
                    *, batch, block_rows, metric_type):
    """One grid step: partial sums over a (TB, D) batch tile."""
    step = pl.program_id(0)
    last = pl.num_programs(0) - 1

    # -- init resident accumulators on the first tile ------------------------
    @pl.when(step == 0)
    def _init():
        loss_ref[...] = jnp.zeros_like(loss_ref)
        dpos_ref[...] = jnp.zeros_like(dpos_ref)
        dneg_ref[...] = jnp.zeros_like(dneg_ref)

    a = a_ref[...].astype(jnp.float32)
    p = p_ref[...].astype(jnp.float32)
    n = n_ref[...].astype(jnp.float32)

    if metric_type == "L2":            # mse_loss(..., reduction='none')
        ep = (a - p) * (a - p)
        en = (a - n) * (a - n)
    else:                              # 'L1' -> l1_loss(..., reduction='none')
        ep = jnp.abs(a - p)
        en = jnp.abs(a - n)

    inv_d = 1.0 / a.shape[1]           # static Python float (feature mean)
    d_pos = jnp.sum(ep, axis=1, keepdims=True) * inv_d   # (TB, 1)
    d_neg = jnp.sum(en, axis=1, keepdims=True) * inv_d   # (TB, 1)

    m_pos = margins_ref[0]             # SMEM scalars
    m_neg = margins_ref[1]
    loss = jnp.maximum(d_pos, m_pos) - jnp.minimum(d_neg, m_neg)  # (TB, 1)

    # -- mask padded rows of a partial remainder tile -------------------------
    row = jax.lax.broadcasted_iota(jnp.int32, d_pos.shape, 0) + step * block_rows
    valid = row < batch
    zero = jnp.zeros_like(d_pos)
    d_pos = jnp.where(valid, d_pos, zero)
    d_neg = jnp.where(valid, d_neg, zero)
    loss = jnp.where(valid, loss, zero)

    # -- accumulate per-tile partial sums (pure vector reduce, (1,1) blocks) --
    loss_ref[...] += jnp.sum(loss, keepdims=True)
    dpos_ref[...] += jnp.sum(d_pos, keepdims=True)
    dneg_ref[...] += jnp.sum(d_neg, keepdims=True)

    # -- finalize: divide accumulated sums by B (not by #tiles) ---------------
    @pl.when(step == last)
    def _fin():
        inv_b = jnp.float32(1.0 / batch)
        loss_ref[...] = loss_ref[...] * inv_b
        dpos_ref[...] = dpos_ref[...] * inv_b
        dneg_ref[...] = dneg_ref[...] * inv_b


def _choose_block_rows(batch, feat, itemsize):
    """Largest batch tile s.t. 3 inputs x 2 buffers x TB x D fits ~24 MiB."""
    sublane = {4: 8, 2: 16, 1: 32}.get(itemsize, 8)
    budget = 24 * 1024 * 1024
    tb = max(sublane, budget // (3 * 2 * feat * itemsize))
    tb = (tb // sublane) * sublane
    if tb >= batch:
        return batch                   # single full-array block (always legal)
    return tb


def triplet_loss(anchor, pos, neg, *, weight=1.0, margin_pos=0.1,
                 margin_neg=1.0, metric_type="L2", block_rows=None):
    """Pallas implementation of TripletLoss.forward (L1 / L2 metric)."""
    assert metric_type in ("L1", "L2")
    assert anchor.ndim == 2 and anchor.shape == pos.shape == neg.shape
    B, D = anchor.shape

    itemsize = jnp.dtype(anchor.dtype).itemsize
    tb = block_rows if block_rows is not None else _choose_block_rows(B, D, itemsize)
    tb = min(tb, B)
    num_tiles = pl.cdiv(B, tb)

    margins = jnp.asarray([margin_pos, margin_neg], dtype=jnp.float32)

    kernel = functools.partial(
        _triplet_kernel, batch=B, block_rows=tb, metric_type=metric_type)

    scalar_out = jax.ShapeDtypeStruct((1, 1), jnp.float32)
    row_spec = pl.BlockSpec((tb, D), lambda i: (i, 0))
    out_spec = pl.BlockSpec((1, 1), lambda i: (0, 0))   # resident accumulator

    loss_cvg, d_pos, d_neg = pl.pallas_call(
        kernel,
        grid=(num_tiles,),
        out_shape=(scalar_out, scalar_out, scalar_out),
        in_specs=[
            pl.BlockSpec(memory_space=pltpu.MemorySpace.SMEM),  # margins (2,)
            row_spec, row_spec, row_spec,
        ],
        out_specs=(out_spec, out_spec, out_spec),
        compiler_params=pltpu.CompilerParams(
            dimension_semantics=("arbitrary",),          # sequential reduction
            vmem_limit_bytes=32 * 1024 * 1024),
    )(margins, anchor, pos, neg)

    loss_cvg = loss_cvg[0, 0]
    d_pos = d_pos[0, 0]
    d_neg = d_neg[0, 0]
    return (jnp.float32(weight) * loss_cvg, (loss_cvg, d_pos, d_neg))


def _reference(anchor, pos, neg, weight=1.0, margin_pos=0.1, margin_neg=1.0,
               metric_type="L2"):
    a = anchor.astype(jnp.float32)
    p = pos.astype(jnp.float32)
    n = neg.astype(jnp.float32)
    if metric_type == "L2":
        d_pos = jnp.mean((a - p) ** 2, axis=1)
        d_neg = jnp.mean((a - n) ** 2, axis=1)
    else:
        d_pos = jnp.mean(jnp.abs(a - p), axis=1)
        d_neg = jnp.mean(jnp.abs(a - n), axis=1)
    loss_cvg = jnp.maximum(d_pos, margin_pos) - jnp.minimum(d_neg, margin_neg)
    return (weight * loss_cvg.mean(),
            (loss_cvg.mean(), d_pos.mean(), d_neg.mean()))


if __name__ == "__main__":
    B, D = 72, 256  # B not a multiple of block_rows -> exercises remainder mask
    key = jax.random.PRNGKey(0)
    k1, k2, k3 = jax.random.split(key, 3)
    anchor = jax.random.normal(k1, (B, D), dtype=jnp.float32)
    pos = anchor + 0.1 * jax.random.normal(k2, (B, D), dtype=jnp.float32)
    neg = jax.random.normal(k3, (B, D), dtype=jnp.float32)

    # L2 path, explicit small tile (5-step grid, last tile masked).
    out = triplet_loss(anchor, pos, neg, weight=2.0,
                       margin_pos=0.1, margin_neg=1.0,
                       metric_type="L2", block_rows=16)
    jax.block_until_ready(out)
    ref = _reference(anchor, pos, neg, weight=2.0,
                     margin_pos=0.1, margin_neg=1.0, metric_type="L2")
    got = jnp.array([out[0], out[1][0], out[1][1], out[1][2]])
    exp = jnp.array([ref[0], ref[1][0], ref[1][1], ref[1][2]])
    assert jnp.allclose(got, exp, rtol=1e-5, atol=1e-5), (got, exp)

    # L1 path, auto tile size (single full-array block).
    out1 = triplet_loss(anchor, pos, neg, weight=1.0,
                        margin_pos=0.2, margin_neg=0.8, metric_type="L1")
    jax.block_until_ready(out1)
    ref1 = _reference(anchor, pos, neg, weight=1.0,
                      margin_pos=0.2, margin_neg=0.8, metric_type="L1")
    got1 = jnp.array([out1[0], out1[1][0], out1[1][1], out1[1][2]])
    exp1 = jnp.array([ref1[0], ref1[1][0], ref1[1][1], ref1[1][2]])
    assert jnp.allclose(got1, exp1, rtol=1e-5, atol=1e-5), (got1, exp1)

    print("KERNEL_OK")
</pallas_src>

<mosaic_0001>
module attributes {stable_mosaic.version = 11 : i64} {
  func.func @_triplet_kernel(%arg0: i32, %arg1: memref<2xf32, #tpu.memory_space<smem>>, %arg2: memref<16x256xf32, #tpu.memory_space<vmem>>, %arg3: memref<16x256xf32, #tpu.memory_space<vmem>>, %arg4: memref<16x256xf32, #tpu.memory_space<vmem>>, %arg5: memref<1x1xf32, #tpu.memory_space<vmem>>, %arg6: memref<1x1xf32, #tpu.memory_space<vmem>>, %arg7: memref<1x1xf32, #tpu.memory_space<vmem>>) attributes {dimension_semantics = [#tpu.dimension_semantics<arbitrary>], iteration_bounds = array<i64: 5>, scalar_prefetch = 0 : i64, scratch_operands = 0 : i64, tpu.core_type = #tpu.core_type<tc>, window_params = [{transform_indices = @transform_0, window_bounds = array<i64: 2>}, {transform_indices = @transform_1, window_bounds = array<i64: 16, 256>}, {transform_indices = @transform_2, window_bounds = array<i64: 16, 256>}, {transform_indices = @transform_3, window_bounds = array<i64: 16, 256>}, {pipeline_mode = #tpu.pipeline_mode<synchronous>, transform_indices = @transform_4, window_bounds = array<i64: 1, 1>}, {pipeline_mode = #tpu.pipeline_mode<synchronous>, transform_indices = @transform_5, window_bounds = array<i64: 1, 1>}, {pipeline_mode = #tpu.pipeline_mode<synchronous>, transform_indices = @transform_6, window_bounds = array<i64: 1, 1>}]} {
    %c0_i32 = arith.constant 0 : i32
    %0 = arith.cmpi eq, %arg0, %c0_i32 : i32
    %1 = arith.extui %0 : i1 to i32
    %c0_i32_0 = arith.constant 0 : i32
    %2 = arith.cmpi ne, %1, %c0_i32_0 : i32
    scf.if %2 {
      %cst_27 = arith.constant 0.000000e+00 : f32
      %64 = vector.broadcast %cst_27 : f32 to vector<1x1xf32>
      %c0_28 = arith.constant 0 : index
      %c0_29 = arith.constant 0 : index
      %65 = vector.load %arg5[%c0_28, %c0_29] : memref<1x1xf32, #tpu.memory_space<vmem>>, vector<1x1xf32>
      tpu.vector_store %arg5[%c0_28, %c0_29], %64 {strides = array<i32>} : memref<1x1xf32, #tpu.memory_space<vmem>>, vector<1x1xf32>,
      %cst_30 = arith.constant 0.000000e+00 : f32
      %66 = vector.broadcast %cst_30 : f32 to vector<1x1xf32>
      %c0_31 = arith.constant 0 : index
      %c0_32 = arith.constant 0 : index
      %67 = vector.load %arg6[%c0_31, %c0_32] : memref<1x1xf32, #tpu.memory_space<vmem>>, vector<1x1xf32>
      tpu.vector_store %arg6[%c0_31, %c0_32], %66 {strides = array<i32>} : memref<1x1xf32, #tpu.memory_space<vmem>>, vector<1x1xf32>,
      %cst_33 = arith.constant 0.000000e+00 : f32
      %68 = vector.broadcast %cst_33 : f32 to vector<1x1xf32>
      %c0_34 = arith.constant 0 : index
      %c0_35 = arith.constant 0 : index
      %69 = vector.load %arg7[%c0_34, %c0_35] : memref<1x1xf32, #tpu.memory_space<vmem>>, vector<1x1xf32>
      tpu.vector_store %arg7[%c0_34, %c0_35], %68 {strides = array<i32>} : memref<1x1xf32, #tpu.memory_space<vmem>>, vector<1x1xf32>,
    } else {
    }
    %c0 = arith.constant 0 : index
    %c0_1 = arith.constant 0 : index
    %3 = vector.load %arg2[%c0, %c0_1] : memref<16x256xf32, #tpu.memory_space<vmem>>, vector<16x256xf32>
    %c0_2 = arith.constant 0 : index
    %c0_3 = arith.constant 0 : index
    %4 = vector.load %arg3[%c0_2, %c0_3] : memref<16x256xf32, #tpu.memory_space<vmem>>, vector<16x256xf32>
    %c0_4 = arith.constant 0 : index
    %c0_5 = arith.constant 0 : index
    %5 = vector.load %arg4[%c0_4, %c0_5] : memref<16x256xf32, #tpu.memory_space<vmem>>, vector<16x256xf32>
    %6 = arith.subf %3, %4 : vector<16x256xf32>
    %7 = arith.subf %3, %4 : vector<16x256xf32>
    %8 = arith.mulf %6, %7 : vector<16x256xf32>
    %9 = arith.subf %3, %5 : vector<16x256xf32>
    %10 = arith.subf %3, %5 : vector<16x256xf32>
    %11 = arith.mulf %9, %10 : vector<16x256xf32>
    %cst = arith.constant dense<0.000000e+00> : vector<16xf32>
    %12 = vector.multi_reduction <add>, %8, %cst [1] : vector<16x256xf32> to vector<16xf32>
    %13 = vector.shape_cast %12 : vector<16xf32> to vector<16x1xf32>
    %cst_6 = arith.constant 3.906250e-03 : f32
    %14 = vector.broadcast %cst_6 : f32 to vector<16x1xf32>
    %15 = arith.mulf %13, %14 : vector<16x1xf32>
    %cst_7 = arith.constant dense<0.000000e+00> : vector<16xf32>
    %16 = vector.multi_reduction <add>, %11, %cst_7 [1] : vector<16x256xf32> to vector<16xf32>
    %17 = vector.shape_cast %16 : vector<16xf32> to vector<16x1xf32>
    %cst_8 = arith.constant 3.906250e-03 : f32
    %18 = vector.broadcast %cst_8 : f32 to vector<16x1xf32>
    %19 = arith.mulf %17, %18 : vector<16x1xf32>
    %c0_9 = arith.constant 0 : index
    %20 = memref.load %arg1[%c0_9] : memref<2xf32, #tpu.memory_space<smem>>
    %c1 = arith.constant 1 : index
    %21 = memref.load %arg1[%c1] : memref<2xf32, #tpu.memory_space<smem>>
    %22 = vector.broadcast %20 : f32 to vector<16x1xf32>
    %23 = arith.maximumf %15, %22 : vector<16x1xf32>
    %24 = vector.broadcast %21 : f32 to vector<16x1xf32>
    %25 = arith.minimumf %19, %24 : vector<16x1xf32>
    %26 = arith.subf %23, %25 : vector<16x1xf32>
    %27 = tpu.iota {dimensions = array<i32: 0>} : vector<16x1xi32>
    %c16_i32 = arith.constant 16 : i32
    %28 = arith.muli %arg0, %c16_i32 : i32
    %29 = vector.broadcast %28 : i32 to vector<16x1xi32>
    %30 = arith.addi %27, %29 : vector<16x1xi32>
    %c72_i32 = arith.constant 72 : i32
    %31 = vector.broadcast %c72_i32 : i32 to vector<16x1xi32>
    %32 = arith.cmpi slt, %30, %31 : vector<16x1xi32>
    %cst_10 = arith.constant 0.000000e+00 : f32
    %33 = vector.broadcast %cst_10 : f32 to vector<16x1xf32>
    %34 = arith.select %32, %15, %33 : vector<16x1xi1>, vector<16x1xf32>
    %35 = arith.select %32, %19, %33 : vector<16x1xi1>, vector<16x1xf32>
    %36 = arith.select %32, %26, %33 : vector<16x1xi1>, vector<16x1xf32>
    %c0_11 = arith.constant 0 : index
    %c0_12 = arith.constant 0 : index
    %37 = vector.load %arg5[%c0_11, %c0_12] : memref<1x1xf32, #tpu.memory_space<vmem>>, vector<1x1xf32>
    %38 = vector.shape_cast %36 : vector<16x1xf32> to vector<1x16x1xf32>
    %cst_13 = arith.constant dense<0.000000e+00> : vector<1xf32>
    %39 = vector.multi_reduction <add>, %38, %cst_13 [1, 2] : vector<1x16x1xf32> to vector<1xf32>
    %40 = vector.shape_cast %39 : vector<1xf32> to vector<1x1x1xf32>
    %41 = vector.extract %40[0, 0, 0] : f32 from vector<1x1x1xf32>
    %42 = vector.broadcast %41 : f32 to vector<1x1xf32>
    %43 = arith.addf %37, %42 : vector<1x1xf32>
    %c0_14 = arith.constant 0 : index
    %c0_15 = arith.constant 0 : index
    %44 = vector.load %arg5[%c0_14, %c0_15] : memref<1x1xf32, #tpu.memory_space<vmem>>, vector<1x1xf32>
    tpu.vector_store %arg5[%c0_14, %c0_15], %43 {strides = array<i32>} : memref<1x1xf32, #tpu.memory_space<vmem>>, vector<1x1xf32>,
    %c0_16 = arith.constant 0 : index
    %c0_17 = arith.constant 0 : index
    %45 = vector.load %arg6[%c0_16, %c0_17] : memref<1x1xf32, #tpu.memory_space<vmem>>, vector<1x1xf32>
    %46 = vector.shape_cast %34 : vector<16x1xf32> to vector<1x16x1xf32>
    %cst_18 = arith.constant dense<0.000000e+00> : vector<1xf32>
    %47 = vector.multi_reduction <add>, %46, %cst_18 [1, 2] : vector<1x16x1xf32> to vector<1xf32>
    %48 = vector.shape_cast %47 : vector<1xf32> to vector<1x1x1xf32>
    %49 = vector.extract %48[0, 0, 0] : f32 from vector<1x1x1xf32>
    %50 = vector.broadcast %49 : f32 to vector<1x1xf32>
    %51 = arith.addf %45, %50 : vector<1x1xf32>
    %c0_19 = arith.constant 0 : index
    %c0_20 = arith.constant 0 : index
    %52 = vector.load %arg6[%c0_19, %c0_20] : memref<1x1xf32, #tpu.memory_space<vmem>>, vector<1x1xf32>
    tpu.vector_store %arg6[%c0_19, %c0_20], %51 {strides = array<i32>} : memref<1x1xf32, #tpu.memory_space<vmem>>, vector<1x1xf32>,
    %c0_21 = arith.constant 0 : index
    %c0_22 = arith.constant 0 : index
    %53 = vector.load %arg7[%c0_21, %c0_22] : memref<1x1xf32, #tpu.memory_space<vmem>>, vector<1x1xf32>
    %54 = vector.shape_cast %35 : vector<16x1xf32> to vector<1x16x1xf32>
    %cst_23 = arith.constant dense<0.000000e+00> : vector<1xf32>
    %55 = vector.multi_reduction <add>, %54, %cst_23 [1, 2] : vector<1x16x1xf32> to vector<1xf32>
    %56 = vector.shape_cast %55 : vector<1xf32> to vector<1x1x1xf32>
    %57 = vector.extract %56[0, 0, 0] : f32 from vector<1x1x1xf32>
    %58 = vector.broadcast %57 : f32 to vector<1x1xf32>
    %59 = arith.addf %53, %58 : vector<1x1xf32>
    %c0_24 = arith.constant 0 : index
    %c0_25 = arith.constant 0 : index
    %60 = vector.load %arg7[%c0_24, %c0_25] : memref<1x1xf32, #tpu.memory_space<vmem>>, vector<1x1xf32>
    tpu.vector_store %arg7[%c0_24, %c0_25], %59 {strides = array<i32>} : memref<1x1xf32, #tpu.memory_space<vmem>>, vector<1x1xf32>,
    %c4_i32 = arith.constant 4 : i32
    %61 = arith.cmpi eq, %arg0, %c4_i32 : i32
    %62 = arith.extui %61 : i1 to i32
    %c0_i32_26 = arith.constant 0 : i32
    %63 = arith.cmpi ne, %62, %c0_i32_26 : i32
    scf.if %63 {
      %c0_27 = arith.constant 0 : index
      %c0_28 = arith.constant 0 : index
      %64 = vector.load %arg5[%c0_27, %c0_28] : memref<1x1xf32, #tpu.memory_space<vmem>>, vector<1x1xf32>
      %cst_29 = arith.constant 0.013888889 : f32
      %65 = vector.broadcast %cst_29 : f32 to vector<1x1xf32>
      %66 = arith.mulf %64, %65 : vector<1x1xf32>
      %c0_30 = arith.constant 0 : index
      %c0_31 = arith.constant 0 : index
      %67 = vector.load %arg5[%c0_30, %c0_31] : memref<1x1xf32, #tpu.memory_space<vmem>>, vector<1x1xf32>
      tpu.vector_store %arg5[%c0_30, %c0_31], %66 {strides = array<i32>} : memref<1x1xf32, #tpu.memory_space<vmem>>, vector<1x1xf32>,
      %c0_32 = arith.constant 0 : index
      %c0_33 = arith.constant 0 : index
      %68 = vector.load %arg6[%c0_32, %c0_33] : memref<1x1xf32, #tpu.memory_space<vmem>>, vector<1x1xf32>
      %cst_34 = arith.constant 0.013888889 : f32
      %69 = vector.broadcast %cst_34 : f32 to vector<1x1xf32>
      %70 = arith.mulf %68, %69 : vector<1x1xf32>
      %c0_35 = arith.constant 0 : index
      %c0_36 = arith.constant 0 : index
      %71 = vector.load %arg6[%c0_35, %c0_36] : memref<1x1xf32, #tpu.memory_space<vmem>>, vector<1x1xf32>
      tpu.vector_store %arg6[%c0_35, %c0_36], %70 {strides = array<i32>} : memref<1x1xf32, #tpu.memory_space<vmem>>, vector<1x1xf32>,
      %c0_37 = arith.constant 0 : index
      %c0_38 = arith.constant 0 : index
      %72 = vector.load %arg7[%c0_37, %c0_38] : memref<1x1xf32, #tpu.memory_space<vmem>>, vector<1x1xf32>
      %cst_39 = arith.constant 0.013888889 : f32
      %73 = vector.broadcast %cst_39 : f32 to vector<1x1xf32>
      %74 = arith.mulf %72, %73 : vector<1x1xf32>
      %c0_40 = arith.constant 0 : index
      %c0_41 = arith.constant 0 : index
      %75 = vector.load %arg7[%c0_40, %c0_41] : memref<1x1xf32, #tpu.memory_space<vmem>>, vector<1x1xf32>
      tpu.vector_store %arg7[%c0_40, %c0_41], %74 {strides = array<i32>} : memref<1x1xf32, #tpu.memory_space<vmem>>, vector<1x1xf32>,
    } else {
    }
    return
  }
  func.func @transform_0(%arg0: i32) -> i32 {
    %c0_i32 = arith.constant 0 : i32
    %c0_i32_0 = arith.constant 0 : i32
    return %c0_i32 : i32
  }
  func.func @transform_1(%arg0: i32) -> (i32, i32) {
    %c0_i32 = arith.constant 0 : i32
    %c0_i32_0 = arith.constant 0 : i32
    return %arg0, %c0_i32 : i32, i32
  }
  func.func @transform_2(%arg0: i32) -> (i32, i32) {
    %c0_i32 = arith.constant 0 : i32
    %c0_i32_0 = arith.constant 0 : i32
    return %arg0, %c0_i32 : i32, i32
  }
  func.func @transform_3(%arg0: i32) -> (i32, i32) {
    %c0_i32 = arith.constant 0 : i32
    %c0_i32_0 = arith.constant 0 : i32
    return %arg0, %c0_i32 : i32, i32
  }
  func.func @transform_4(%arg0: i32) -> (i32, i32) {
    %c0_i32 = arith.constant 0 : i32
    %c0_i32_0 = arith.constant 0 : i32
    %c0_i32_1 = arith.constant 0 : i32
    return %c0_i32, %c0_i32_0 : i32, i32
  }
  func.func @transform_5(%arg0: i32) -> (i32, i32) {
    %c0_i32 = arith.constant 0 : i32
    %c0_i32_0 = arith.constant 0 : i32
    %c0_i32_1 = arith.constant 0 : i32
    return %c0_i32, %c0_i32_0 : i32, i32
  }
  func.func @transform_6(%arg0: i32) -> (i32, i32) {
    %c0_i32 = arith.constant 0 : i32
    %c0_i32_0 = arith.constant 0 : i32
    %c0_i32_1 = arith.constant 0 : i32
    return %c0_i32, %c0_i32_0 : i32, i32
  }
}

</mosaic_0001>

<llo_original>
// kernel: tpu_custom_call.1
$region0: #{tpu_custom_call.1}
  #allocation0 [shape = 'u32[]', space=smem, size = 0x4, offset = 0x4, fixed_abs, tag = 'smem constant byte address 0x4 - core index']
  #allocation1 [shape = 'u32[144,128]{1,0:T(1,128)}', space=vmem, size = 0x12000, scoped, tag = 'internal scratch']
  %s0 = inlined_call_operand.hbm [shape: f32[2], index: 0, kind: input, shape index: {}]
  %s1 = inlined_call_operand.hbm [shape: f32[72,256], index: 1, kind: input, shape index: {}]
  %s2 = inlined_call_operand.hbm [shape: f32[72,256], index: 2, kind: input, shape index: {}]
  %s3 = inlined_call_operand.hbm [shape: f32[72,256], index: 3, kind: input, shape index: {}]
  %s4 = inlined_call_operand.hbm [shape: f32[1,1], index: 4, kind: output, shape index: {0}]
  %s5 = inlined_call_operand.hbm [shape: f32[1,1], index: 5, kind: output, shape index: {1}]
  %s6 = inlined_call_operand.hbm [shape: f32[1,1], index: 6, kind: output, shape index: {2}]
  %7 = xla_tuple %s4, %s5, %s6
  %s8 = sld [smem:[#allocation0]]
  $region89: #{tpu_custom_call.1} parent=0
    _
  %s10 = ssub.s32 1, %s8
  %s11 = scalar_select 0, %s10, %s8
  $region1: #{tpu_custom_call.1} parent=0
    #allocation2 [shape = 'u8[512]{0}', space=smem, size = 0x200, scoped, tag = 'input window, operand 0, single buffered']
    #allocation3 [shape = 's32[2]{0}', space=sflag, size = 0x8, scoped, tag = 'scoped memory for tpu_custom_call.1']
    #allocation4 [shape = 's32[2]{0}', space=sflag, size = 0x8, scoped, tag = 'scoped memory for tpu_custom_call.1']
    #allocation5 [shape = 's32[2]{0}', space=sflag, size = 0x8, scoped, tag = 'scoped memory for tpu_custom_call.1']
    #allocation6 [shape = 'u8[32768]{0}', space=vmem, size = 0x8000, scoped, tag = 'input window, operand 1']
    #allocation7 [shape = 'u8[32768]{0}', space=vmem, size = 0x8000, scoped, tag = 'input window, operand 2']
    #allocation8 [shape = 's32[2]{0}', space=sflag, size = 0x8, scoped, tag = 'scoped memory for tpu_custom_call.1']
    #allocation9 [shape = 'u8[32768]{0}', space=vmem, size = 0x8000, scoped, tag = 'input window, operand 3']
    #allocation10 [shape = 'u8[512]{0}', space=vmem, size = 0x400, scoped, tag = 'output window, operand 0, single buffered']
    #allocation11 [shape = 'u8[512]{0}', space=vmem, size = 0x400, scoped, tag = 'output window, operand 1, single buffered']
    #allocation12 [shape = 's32[1]{0}', space=sflag, size = 0x4, scoped, tag = 'scoped memory for tpu_custom_call.1']
    #allocation13 [shape = 'u8[512]{0}', space=vmem, size = 0x400, scoped, tag = 'output window, operand 2, single buffered']
    %12 = vsyncpa [#allocation5], 0
    %13 = vsyncpa [#allocation3], 0
    %s14 = scalar_lea.sflag [#allocation3], 1
    %15 = vsyncpa %s14, 0
    %16 = vsyncpa [#allocation8], 0
    %s17 = scalar_lea.sflag [#allocation8], 1
    %18 = vsyncpa %s17, 0
    %19 = vsyncpa [#allocation4], 0
    %20 = vsyncpa [#allocation12], 0
    loop: start=0, step=1, limit=7
    $region2: #{tpu_custom_call.1} parent=1 // loop_pre_header
      _
    $region3: #{tpu_custom_call.1} parent=1 // loop_header
      %s22 = sphi 0, %s26
      %p23 = scmp.ge.s32.totalorder %s22, 7
      %s30 = sphi 0, %s30
      %s32 = sphi 0, %s30
      %s33 = sphi 0, %s32
      %s47 = sphi 0, %s33
      %s53 = sphi 0, %s55
      %s56 = sphi 0, %s53
      %s57 = sphi 0, %s56
      %s73 = sphi 0, %s57
      %s79 = sphi 0, %s81
      %s82 = sphi 0, %s79
      %s83 = sphi 0, %s82
      %s99 = sphi 0, %s83
      %s105 = sphi 0, %s107
      %s108 = sphi 0, %s105
      %s109 = sphi 0, %s108
      %s125 = sphi 0, %s109
      %s129 = sphi 0, %s129
      %s131 = sphi 0, %s129
      %s132 = sphi 0, %s131
      %s146 = sphi 0, %s132
      %s150 = sphi 0, %s150
      %s152 = sphi 0, %s150
      %s153 = sphi 0, %s152
      %s167 = sphi 0, %s153
      %s171 = sphi 0, %s171
      %s173 = sphi 0, %s171
      %s174 = sphi 0, %s173
      %s188 = sphi 0, %s174
    $region4: #{tpu_custom_call.1} parent=1 // loop_header_branch
      %25 = sbr.rel (%p23) target = $region8
    $region5: #{tpu_custom_call.1} parent=1 // loop_body
      %s27 = ssub.s32 %s22, 1
      %s28 = ssub.s32 %s22, 2
      %s29 = sadd.s32 %s22, 1
      %s31 = sadd.s32 %s30, 1
      %p34 = scmp.eq.s32.totalorder %s22, 4
      %p35 = scmp.ne.s32.totalorder %s30, %s32
      %p36 = scmp.eq.s32.totalorder %s22, 0
      %p37 = por %p35, %p36
      %p38 = scmp.ne.s32.totalorder %s30, %s32
      %p39 = scmp.eq.s32.totalorder %s27, 4
      %p40 = por %p38, %p39
      %p41 = scmp.ne.s32.totalorder %s32, %s33
      %p42 = scmp.eq.s32.totalorder %s27, 0
      %p43 = por %p41, %p42
      %p44 = scmp.ne.s32.totalorder %s32, %s33
      %p45 = scmp.eq.s32.totalorder %s28, 4
      %p46 = por %p44, %p45
      %p48 = scmp.ne.s32.totalorder %s33, %s47
      %p49 = scmp.eq.s32.totalorder %s28, 0
      %p50 = por %p48, %p49
      %s51 = ssub.s32 %s22, %s29
      %p52 = scmp.eq.s32.totalorder %s51, 0
      %s54 = sadd.s32 %s53, 1
      %s55 = scalar_select %p52, %s53, %s54
      %p58 = pneg %p52
      %p59 = scmp.eq.s32.totalorder %s22, 4
      %p60 = por %p58, %p59
      %p61 = scmp.ne.s32.totalorder %s53, %s56
      %p62 = scmp.eq.s32.totalorder %s22, 0
      %p63 = por %p61, %p62
      %p64 = scmp.ne.s32.totalorder %s53, %s56
      %p65 = scmp.eq.s32.totalorder %s27, 4
      %p66 = por %p64, %p65
      %p67 = scmp.ne.s32.totalorder %s56, %s57
      %p68 = scmp.eq.s32.totalorder %s27, 0
      %p69 = por %p67, %p68
      %p70 = scmp.ne.s32.totalorder %s56, %s57
      %p71 = scmp.eq.s32.totalorder %s28, 4
      %p72 = por %p70, %p71
      %p74 = scmp.ne.s32.totalorder %s57, %s73
      %p75 = scmp.eq.s32.totalorder %s28, 0
      %p76 = por %p74, %p75
      %s77 = ssub.s32 %s22, %s29
      %p78 = scmp.eq.s32.totalorder %s77, 0
      %s80 = sadd.s32 %s79, 1
      %s81 = scalar_select %p78, %s79, %s80
      %p84 = pneg %p78
      %p85 = scmp.eq.s32.totalorder %s22, 4
      %p86 = por %p84, %p85
      %p87 = scmp.ne.s32.totalorder %s79, %s82
      %p88 = scmp.eq.s32.totalorder %s22, 0
      %p89 = por %p87, %p88
      %p90 = scmp.ne.s32.totalorder %s79, %s82
      %p91 = scmp.eq.s32.totalorder %s27, 4
      %p92 = por %p90, %p91
      %p93 = scmp.ne.s32.totalorder %s82, %s83
      %p94 = scmp.eq.s32.totalorder %s27, 0
      %p95 = por %p93, %p94
      %p96 = scmp.ne.s32.totalorder %s82, %s83
      %p97 = scmp.eq.s32.totalorder %s28, 4
      %p98 = por %p96, %p97
      %p100 = scmp.ne.s32.totalorder %s83, %s99
      %p101 = scmp.eq.s32.totalorder %s28, 0
      %p102 = por %p100, %p101
      %s103 = ssub.s32 %s22, %s29
      %p104 = scmp.eq.s32.totalorder %s103, 0
      %s106 = sadd.s32 %s105, 1
      %s107 = scalar_select %p104, %s105, %s106
      %p110 = pneg %p104
      %p111 = scmp.eq.s32.totalorder %s22, 4
      %p112 = por %p110, %p111
      %p113 = scmp.ne.s32.totalorder %s105, %s108
      %p114 = scmp.eq.s32.totalorder %s22, 0
      %p115 = por %p113, %p114
      %p116 = scmp.ne.s32.totalorder %s105, %s108
      %p117 = scmp.eq.s32.totalorder %s27, 4
      %p118 = por %p116, %p117
      %p119 = scmp.ne.s32.totalorder %s108, %s109
      %p120 = scmp.eq.s32.totalorder %s27, 0
      %p121 = por %p119, %p120
      %p122 = scmp.ne.s32.totalorder %s108, %s109
      %p123 = scmp.eq.s32.totalorder %s28, 4
      %p124 = por %p122, %p123
      %p126 = scmp.ne.s32.totalorder %s109, %s125
      %p127 = scmp.eq.s32.totalorder %s28, 0
      %p128 = por %p126, %p127
      %s130 = sadd.s32 %s129, 1
      %p133 = scmp.eq.s32.totalorder %s22, 4
      %p134 = scmp.ne.s32.totalorder %s129, %s131
      %p135 = scmp.eq.s32.totalorder %s22, 0
      %p136 = por %p134, %p135
      %p137 = scmp.ne.s32.totalorder %s129, %s131
      %p138 = scmp.eq.s32.totalorder %s27, 4
      %p139 = por %p137, %p138
      %p140 = scmp.ne.s32.totalorder %s131, %s132
      %p141 = scmp.eq.s32.totalorder %s27, 0
      %p142 = por %p140, %p141
      %p143 = scmp.ne.s32.totalorder %s131, %s132
      %p144 = scmp.eq.s32.totalorder %s28, 4
      %p145 = por %p143, %p144
      %p147 = scmp.ne.s32.totalorder %s132, %s146
      %p148 = scmp.eq.s32.totalorder %s28, 0
      %p149 = por %p147, %p148
      %s151 = sadd.s32 %s150, 1
      %p154 = scmp.eq.s32.totalorder %s22, 4
      %p155 = scmp.ne.s32.totalorder %s150, %s152
      %p156 = scmp.eq.s32.totalorder %s22, 0
      %p157 = por %p155, %p156
      %p158 = scmp.ne.s32.totalorder %s150, %s152
      %p159 = scmp.eq.s32.totalorder %s27, 4
      %p160 = por %p158, %p159
      %p161 = scmp.ne.s32.totalorder %s152, %s153
      %p162 = scmp.eq.s32.totalorder %s27, 0
      %p163 = por %p161, %p162
      %p164 = scmp.ne.s32.totalorder %s152, %s153
      %p165 = scmp.eq.s32.totalorder %s28, 4
      %p166 = por %p164, %p165
      %p168 = scmp.ne.s32.totalorder %s153, %s167
      %p169 = scmp.eq.s32.totalorder %s28, 0
      %p170 = por %p168, %p169
      %s172 = sadd.s32 %s171, 1
      %p175 = scmp.eq.s32.totalorder %s22, 4
      %p176 = scmp.ne.s32.totalorder %s171, %s173
      %p177 = scmp.eq.s32.totalorder %s22, 0
      %p178 = por %p176, %p177
      %p179 = scmp.ne.s32.totalorder %s171, %s173
      %p180 = scmp.eq.s32.totalorder %s27, 4
      %p181 = por %p179, %p180
      %p182 = scmp.ne.s32.totalorder %s173, %s174
      %p183 = scmp.eq.s32.totalorder %s27, 0
      %p184 = por %p182, %p183
      %p185 = scmp.ne.s32.totalorder %s173, %s174
      %p186 = scmp.eq.s32.totalorder %s28, 4
      %p187 = por %p185, %p186
      %p189 = scmp.ne.s32.totalorder %s174, %s188
      %p190 = scmp.eq.s32.totalorder %s28, 0
      %p191 = por %p189, %p190
      %p192 = scmp.le.s32.totalorder 1, %s22
      %p193 = scmp.lt.s32.totalorder %s22, 6
      %p194 = pnand %p192, %p193
      %p195 = pneg %p194
      // Predicated region
      $region9: #{tpu_custom_call.1} parent=5 // pred_check
        _
      $region10: #{tpu_custom_call.1} parent=5 // pred_check_branch
        %197 = sbr.rel (%p194) target = $region12
      $region11: #{tpu_custom_call.1} parent=5 // pred_region
        %s198 = ssub.s32 %s22, 1
        // Predicated region
        $region13: #{tpu_custom_call.1} parent=11 // pred_check
          %p199 = pneg %p43
        $region14: #{tpu_custom_call.1} parent=11 // pred_check_branch
          %201 = sbr.rel (%p199) target = $region16
        $region15: #{tpu_custom_call.1} parent=11 // pred_region
          %s203 = ssub.s32 16, 16
          %204 = vsyncadd [#allocation5], %s203
          %207 = dma.hbm_to_smem %s0, 16, [#allocation2], [#allocation5]
        $region16: #{tpu_custom_call.1} parent=11 // pred_fallthru
          _
      $region12: #{tpu_custom_call.1} parent=5 // pred_fallthru
        _
      %p208 = scmp.lt.s32.totalorder %s22, 5
      // Predicated region
      $region17: #{tpu_custom_call.1} parent=5 // pred_check
        %p209 = pneg %p208
      $region18: #{tpu_custom_call.1} parent=5 // pred_check_branch
        %211 = sbr.rel (%p209) target = $region20
      $region19: #{tpu_custom_call.1} parent=5 // pred_region
        // Predicated region
        $region21: #{tpu_custom_call.1} parent=19 // pred_check
          %p212 = pneg %p63
        $region22: #{tpu_custom_call.1} parent=19 // pred_check_branch
          %214 = sbr.rel (%p212) target = $region24
        $region23: #{tpu_custom_call.1} parent=19 // pred_region
          %s215 = sand.u32 %s53, 1
          %s216 = scalar_lea.sflag [#allocation3], %s215
          %s217 = sand.u32 %s53, 1
          %s218 = smul.addr %s217, 32
          %s219 = scalar_lea.vmem [#allocation6], %s218
          %s220 = smul.u32 2, %s22
          %s221 = ssub.s32 9, %s220
          %p222 = scmp.lt.s32.totalorder %s221, 2
          %s223 = scalar_select %p222, %s221, 2
          %s224 = smul.u32 128, %s223
          %s225 = smul.u32 %s224, 2
          %s227 = ssub.s32 512, %s225
          %228 = vsyncadd %s216, %s227
          %p229 = scmp.ne.s32.totalorder 0, %s225
          %s230 = smul.addr %s220, 2
          %s231 = smul.addr %s230, 128
          %s232 = scalar_lea.hbm %s1, %s231
          %s233 = smul.u32 16, %s223
          %s234 = sshll.u32 %s219, 4
          %s235 = int_to_ptr.vmem [resolvable:$true] %s234
          %s236 = sshll.u32 %s233, 4
          %240 = dma.hbm_to_vmem [thread:$0]  (%p229), %s232, %s236, %s235, %s216, 256, 256, 16
        $region24: #{tpu_custom_call.1} parent=19 // pred_fallthru
          _
        // Predicated region
        $region25: #{tpu_custom_call.1} parent=19 // pred_check
          %p241 = pneg %p89
        $region26: #{tpu_custom_call.1} parent=19 // pred_check_branch
          %243 = sbr.rel (%p241) target = $region28
        $region27: #{tpu_custom_call.1} parent=19 // pred_region
          %s244 = sand.u32 %s22, 1
          %s245 = scalar_lea.sflag [#allocation8], %s244
          %s246 = sand.u32 %s79, 1
          %s247 = smul.addr %s246, 32
          %s248 = scalar_lea.vmem [#allocation7], %s247
          %s249 = smul.u32 2, %s22
          %s250 = ssub.s32 9, %s249
          %p251 = scmp.lt.s32.totalorder %s250, 2
          %s252 = scalar_select %p251, %s250, 2
          %s253 = smul.u32 128, %s252
          %s254 = smul.u32 %s253, 2
          %s256 = ssub.s32 512, %s254
          %257 = vsyncadd %s245, %s256
          %p258 = scmp.ne.s32.totalorder 0, %s254
          %s259 = smul.addr %s249, 2
          %s260 = smul.addr %s259, 128
          %s261 = scalar_lea.hbm %s2, %s260
          %s262 = smul.u32 16, %s252
          %s263 = sshll.u32 %s248, 4
          %s264 = int_to_ptr.vmem [resolvable:$true] %s263
          %s265 = sshll.u32 %s262, 4
          %269 = dma.hbm_to_vmem [thread:$0]  (%p258), %s261, %s265, %s264, %s245, 256, 256, 16
        $region28: #{tpu_custom_call.1} parent=19 // pred_fallthru
          _
        // Predicated region
        $region29: #{tpu_custom_call.1} parent=19 // pred_check
          %p270 = pneg %p115
        $region30: #{tpu_custom_call.1} parent=19 // pred_check_branch
          %272 = sbr.rel (%p270) target = $region32
        $region31: #{tpu_custom_call.1} parent=19 // pred_region
          %s273 = sand.u32 %s22, 1
          %s274 = scalar_lea.sflag [#allocation8], %s273
          %s275 = sand.u32 %s105, 1
          %s276 = smul.addr %s275, 32
          %s277 = scalar_lea.vmem [#allocation9], %s276
          %s278 = smul.u32 2, %s22
          %s279 = ssub.s32 9, %s278
          %p280 = scmp.lt.s32.totalorder %s279, 2
          %s281 = scalar_select %p280, %s279, 2
          %s282 = smul.u32 128, %s281
          %s283 = smul.u32 %s282, 2
          %s285 = ssub.s32 512, %s283
          %286 = vsyncadd %s274, %s285
          %p287 = scmp.ne.s32.totalorder 0, %s283
          %s288 = smul.addr %s278, 2
          %s289 = smul.addr %s288, 128
          %s290 = scalar_lea.hbm %s3, %s289
          %s291 = smul.u32 16, %s281
          %s292 = sshll.u32 %s277, 4
          %s293 = int_to_ptr.vmem [resolvable:$true] %s292
          %s294 = sshll.u32 %s291, 4
          %298 = dma.hbm_to_vmem [thread:$0]  (%p287), %s290, %s294, %s293, %s274, 256, 256, 16
        $region32: #{tpu_custom_call.1} parent=19 // pred_fallthru
          _
      $region20: #{tpu_custom_call.1} parent=5 // pred_fallthru
        _
      %p299 = scmp.le.s32.totalorder 1, %s22
      %p300 = scmp.lt.s32.totalorder %s22, 6
      %p301 = pnand %p299, %p300
      %p302 = pneg %p301
      // Predicated region
      $region33: #{tpu_custom_call.1} parent=5 // pred_check
        _
      $region34: #{tpu_custom_call.1} parent=5 // pred_check_branch
        %304 = sbr.rel (%p301) target = $region36
      $region35: #{tpu_custom_call.1} parent=5 // pred_region
        %s305 = ssub.s32 %s22, 1
        // Predicated region
        $region37: #{tpu_custom_call.1} parent=35 // pred_check
          %p306 = pneg %p43
        $region38: #{tpu_custom_call.1} parent=35 // pred_check_branch
          %308 = sbr.rel (%p306) target = $region40
        $region39: #{tpu_custom_call.1} parent=35 // pred_region
          %309 = dma.done [#allocation5], 16
        $region40: #{tpu_custom_call.1} parent=35 // pred_fallthru
          _
        %s310 = sand.u32 %s56, 1
        %s311 = scalar_lea.sflag [#allocation3], %s310
        %s312 = sand.u32 %s56, 1
        %s313 = smul.addr %s312, 32
        %s314 = scalar_lea.vmem [#allocation6], %s313
        // Predicated region
        $region41: #{tpu_custom_call.1} parent=35 // pred_check
          %p315 = pneg %p69
        $region42: #{tpu_custom_call.1} parent=35 // pred_check_branch
          %317 = sbr.rel (%p315) target = $region44
        $region43: #{tpu_custom_call.1} parent=35 // pred_region
          %318 = dma.done %s311, 512
        $region44: #{tpu_custom_call.1} parent=35 // pred_fallthru
          _
        %s319 = sand.u32 %s27, 1
        %s320 = scalar_lea.sflag [#allocation8], %s319
        %s321 = sand.u32 %s82, 1
        %s322 = smul.addr %s321, 32
        %s323 = scalar_lea.vmem [#allocation7], %s322
        // Predicated region
        $region45: #{tpu_custom_call.1} parent=35 // pred_check
          %p324 = pneg %p95
        $region46: #{tpu_custom_call.1} parent=35 // pred_check_branch
          %326 = sbr.rel (%p324) target = $region48
        $region47: #{tpu_custom_call.1} parent=35 // pred_region
          %327 = dma.done %s320, 512
        $region48: #{tpu_custom_call.1} parent=35 // pred_fallthru
          _
        %s328 = sand.u32 %s27, 1
        %s329 = scalar_lea.sflag [#allocation8], %s328
        %s330 = sand.u32 %s108, 1
        %s331 = smul.addr %s330, 32
        %s332 = scalar_lea.vmem [#allocation9], %s331
        // Predicated region
        $region49: #{tpu_custom_call.1} parent=35 // pred_check
          %p333 = pneg %p121
        $region50: #{tpu_custom_call.1} parent=35 // pred_check_branch
          %335 = sbr.rel (%p333) target = $region52
        $region51: #{tpu_custom_call.1} parent=35 // pred_region
          %336 = dma.done %s329, 512
        $region52: #{tpu_custom_call.1} parent=35 // pred_fallthru
          _
        %337 = sfence
        %p338 = pneg %p43
        %p339 = pneg %p40
        %s340 = sand.u32 %s56, 1
        %s341 = scalar_lea.sflag [#allocation3], %s340
        %s342 = sand.u32 %s56, 1
        %s343 = smul.addr %s342, 32
        %s344 = scalar_lea.vmem [#allocation6], %s343
        %p345 = pneg %p69
        %p346 = pneg %p66
        %s347 = sand.u32 %s27, 1
        %s348 = scalar_lea.sflag [#allocation8], %s347
        %s349 = sand.u32 %s82, 1
        %s350 = smul.addr %s349, 32
        %s351 = scalar_lea.vmem [#allocation7], %s350
        %p352 = pneg %p95
        %p353 = pneg %p92
        %s354 = sand.u32 %s27, 1
        %s355 = scalar_lea.sflag [#allocation8], %s354
        %s356 = sand.u32 %s108, 1
        %s357 = smul.addr %s356, 32
        %s358 = scalar_lea.vmem [#allocation9], %s357
        %p359 = pneg %p121
        %p360 = pneg %p118
        %p361 = pneg %p142
        %p362 = pneg %p139
        %p363 = pneg %p163
        %p364 = pneg %p160
        %p365 = pneg %p184
        %p366 = pneg %p181
        %s367 = smul.u32 2, %s27
        %s368 = ssub.s32 9, %s367
        %p369 = scmp.lt.s32.totalorder %s368, 2
        %s370 = scalar_select %p369, %s368, 2
        %s371 = smul.u32 128, %s370
        %s372 = smul.u32 %s371, 2
        %s373 = smul.u32 2, %s27
        %s374 = ssub.s32 9, %s373
        %p375 = scmp.lt.s32.totalorder %s374, 2
        %s376 = scalar_select %p375, %s374, 2
        %s377 = smul.u32 128, %s376
        %s378 = smul.u32 %s377, 2
        %s379 = smul.u32 2, %s27
        %s380 = ssub.s32 9, %s379
        %p381 = scmp.lt.s32.totalorder %s380, 2
        %s382 = scalar_select %p381, %s380, 2
        %s383 = smul.u32 128, %s382
        %s384 = smul.u32 %s383, 2
        %p385 = scmp.eq.s32.totalorder %s27, 0
        // Predicated region
        $region53: #{tpu_custom_call.1} parent=35 // pred_check
          %p386 = pneg %p385
        $region54: #{tpu_custom_call.1} parent=35 // pred_check_branch
          %388 = sbr.rel (%p386) target = $region56
        $region55: #{tpu_custom_call.1} parent=35 // pred_region
          %vm389 = vcmask 0
          %390 = vst.msk [vmem:[#allocation10] sm:$0x1] %vm389, 0.0
          %391 = vst.msk [vmem:[#allocation11] sm:$0x1] %vm389, 0.0
          %392 = vst.msk [vmem:[#allocation13] sm:$0x1] %vm389, 0.0
        $region56: #{tpu_custom_call.1} parent=35 // pred_fallthru
          _
        %v393 = vld [vmem:[%s314] sm:$0xff]
        %v394 = vld [vmem:[%s314 + $0x8] sm:$0xff]
        %v395 = vld [vmem:[%s314 + $0x10] sm:$0xff]
        %v396 = vld [vmem:[%s314 + $0x18] sm:$0xff]
        %v397 = vld [vmem:[%s323] sm:$0xff]
        %v398 = vld [vmem:[%s323 + $0x8] sm:$0xff]
        %v399 = vld [vmem:[%s323 + $0x10] sm:$0xff]
        %v400 = vld [vmem:[%s323 + $0x18] sm:$0xff]
        %v401 = vld [vmem:[%s332] sm:$0xff]
        %v402 = vld [vmem:[%s332 + $0x8] sm:$0xff]
        %v403 = vld [vmem:[%s332 + $0x10] sm:$0xff]
        %v404 = vld [vmem:[%s332 + $0x18] sm:$0xff]
        %v405 = vsub.f32 %v393, %v397
        %v406 = vsub.f32 %v394, %v398
        %v407 = vsub.f32 %v395, %v399
        %v408 = vsub.f32 %v396, %v400
        %v409 = vmul.f32 %v405, %v405
        %v410 = vmul.f32 %v406, %v406
        %v411 = vmul.f32 %v407, %v407
        %v412 = vmul.f32 %v408, %v408
        %v413 = vsub.f32 %v393, %v401
        %v414 = vsub.f32 %v394, %v402
        %v415 = vsub.f32 %v395, %v403
        %v416 = vsub.f32 %v396, %v404
        %v417 = vmul.f32 %v413, %v413
        %v418 = vmul.f32 %v414, %v414
        %v419 = vmul.f32 %v415, %v415
        %v420 = vmul.f32 %v416, %v416
        %v421 = vadd.f32 %v409, %v410
        %422 = vadd.xlane.f32.xlu0 %v421
        %v423 = vpop.xlane.xlu0 %422
        %v424 = vadd.f32 %v411, %v412
        %425 = vadd.xlane.f32.xlu0 %v424
        %v426 = vpop.xlane.xlu0 %425
        %v427 = vmul.f32 %v423, 0.00390625
        %v428 = vmul.f32 %v426, 0.00390625
        %v429 = vadd.f32 %v417, %v418
        %430 = vadd.xlane.f32.xlu0 %v429
        %v431 = vpop.xlane.xlu0 %430
        %v432 = vadd.f32 %v419, %v420
        %433 = vadd.xlane.f32.xlu0 %v432
        %v434 = vpop.xlane.xlu0 %433
        %v435 = vmul.f32 %v431, 0.00390625
        %v436 = vmul.f32 %v434, 0.00390625
        %s437 = sld [smem:[#allocation2]]
        %s438 = sld [smem:[#allocation2 + $0x1]]
        %v439 = vstv %s437
        %v440 = vmax.f32 %v427, %v439
        %v441 = vmax.f32 %v428, %v439
        %v442 = vstv %s438
        %v443 = vmin.f32 %v435, %v442
        %v444 = vmin.f32 %v436, %v442
        %v445 = vsub.f32 %v440, %v443
        %v446 = vsub.f32 %v441, %v444
        %v447 = vlaneseq
        %v448 = vshrl.u32 %v447, 7
        %v449 = vadd.s32 %v448, 8
        %s450 = smul.u32 %s27, 16
        %v451 = vstv %s450
        %v452 = vadd.s32 %v448, %v451
        %v453 = vadd.s32 %v449, %v451
        %vm454 = vcmp.lt.s32.totalorder %v452, 72
        %vm455 = vcmp.lt.s32.totalorder %v453, 72
        %v456 = vsel %vm454, %v427, 0.0
        %v457 = vsel %vm455, %v428, 0.0
        %v458 = vsel %vm454, %v435, 0.0
        %v459 = vsel %vm455, %v436, 0.0
        %v460 = vsel %vm454, %v445, 0.0
        %v461 = vsel %vm455, %v446, 0.0
        %v462 = vld [vmem:[#allocation10] sm:$0x1]
        %vm463 = vcmask 7168
        %v464 = vsel %vm463, %v460, 0.0
        %v465 = vsel %vm463, %v461, 0.0
        %v466 = vadd.f32 %v464, %v465
        %467 = vadd.xlane.f32.xlu0 %v466
        %v468 = vpop.xlane.xlu0 %467
        %v469 = vrot.slane %v468, 4
        %v470 = vadd.f32 %v468, %v469
        %v471 = vrot.slane %v470, 2
        %v472 = vadd.f32 %v470, %v471
        %v473 = vrot.slane %v472, 1
        %v474 = vadd.f32 %v472, %v473
        %s475 = vtos %v474
        %v476 = vstv %s475
        %v477 = vadd.f32 %v462, %v476
        %vm478 = vcmask 0
        %479 = vst.msk [vmem:[#allocation10] sm:$0x1] %vm478, %v477
        %v480 = vld [vmem:[#allocation11] sm:$0x1]
        %v481 = vsel %vm463, %v456, 0.0
        %v482 = vsel %vm463, %v457, 0.0
        %v483 = vadd.f32 %v481, %v482
        %484 = vadd.xlane.f32.xlu0 %v483
        %v485 = vpop.xlane.xlu0 %484
        %v486 = vrot.slane %v485, 4
        %v487 = vadd.f32 %v485, %v486
        %v488 = vrot.slane %v487, 2
        %v489 = vadd.f32 %v487, %v488
        %v490 = vrot.slane %v489, 1
        %v491 = vadd.f32 %v489, %v490
        %s492 = vtos %v491
        %v493 = vstv %s492
        %v494 = vadd.f32 %v480, %v493
        %495 = vst.msk [vmem:[#allocation11] sm:$0x1] %vm478, %v494
        %v496 = vld [vmem:[#allocation13] sm:$0x1]
        %v497 = vsel %vm463, %v458, 0.0
        %v498 = vsel %vm463, %v459, 0.0
        %v499 = vadd.f32 %v497, %v498
        %500 = vadd.xlane.f32.xlu0 %v499
        %v501 = vpop.xlane.xlu0 %500
        %v502 = vrot.slane %v501, 4
        %v503 = vadd.f32 %v501, %v502
        %v504 = vrot.slane %v503, 2
        %v505 = vadd.f32 %v503, %v504
        %v506 = vrot.slane %v505, 1
        %v507 = vadd.f32 %v505, %v506
        %s508 = vtos %v507
        %v509 = vstv %s508
        %v510 = vadd.f32 %v496, %v509
        %511 = vst.msk [vmem:[#allocation13] sm:$0x1] %vm478, %v510
        %p512 = scmp.eq.s32.totalorder %s27, 4
        // Predicated region
        $region57: #{tpu_custom_call.1} parent=35 // pred_check
          %p513 = pneg %p512
        $region58: #{tpu_custom_call.1} parent=35 // pred_check_branch
          %515 = sbr.rel (%p513) target = $region60
        $region59: #{tpu_custom_call.1} parent=35 // pred_region
          %v516 = vld [vmem:[#allocation10] sm:$0x1]
          %v517 = vmul.f32 %v516, 0.013888889
          %518 = vst.msk [vmem:[#allocation10] sm:$0x1] %vm478, %v517
          %v519 = vld [vmem:[#allocation11] sm:$0x1]
          %v520 = vmul.f32 %v519, 0.013888889
          %521 = vst.msk [vmem:[#allocation11] sm:$0x1] %vm478, %v520
          %v522 = vld [vmem:[#allocation13] sm:$0x1]
          %v523 = vmul.f32 %v522, 0.013888889
          %524 = vst.msk [vmem:[#allocation13] sm:$0x1] %vm478, %v523
        $region60: #{tpu_custom_call.1} parent=35 // pred_fallthru
          _
        // Predicated region
        $region61: #{tpu_custom_call.1} parent=35 // pred_check
          %p525 = pneg %p139
        $region62: #{tpu_custom_call.1} parent=35 // pred_check_branch
          %527 = sbr.rel (%p525) target = $region64
        $region63: #{tpu_custom_call.1} parent=35 // pred_region
          %s529 = ssub.s32 16, 16
          %530 = vsyncadd [#allocation4], %s529
          %s532 = sshll.u32 [#allocation10], 4
          %s533 = int_to_ptr.vmem [resolvable:$true] %s532
          %535 = dma.vmem_to_hbm [thread:$0]  %s533, 16, %s4, [#allocation4]
        $region64: #{tpu_custom_call.1} parent=35 // pred_fallthru
          _
        // Predicated region
        $region65: #{tpu_custom_call.1} parent=35 // pred_check
          %p536 = pneg %p160
        $region66: #{tpu_custom_call.1} parent=35 // pred_check_branch
          %538 = sbr.rel (%p536) target = $region68
        $region67: #{tpu_custom_call.1} parent=35 // pred_region
          %s540 = ssub.s32 16, 16
          %541 = vsyncadd [#allocation12], %s540
          %s543 = sshll.u32 [#allocation11], 4
          %s544 = int_to_ptr.vmem [resolvable:$true] %s543
          %546 = dma.vmem_to_hbm [thread:$0]  %s544, 16, %s5, [#allocation12]
        $region68: #{tpu_custom_call.1} parent=35 // pred_fallthru
          _
        // Predicated region
        $region69: #{tpu_custom_call.1} parent=35 // pred_check
          %p547 = pneg %p181
        $region70: #{tpu_custom_call.1} parent=35 // pred_check_branch
          %549 = sbr.rel (%p547) target = $region72
        $region71: #{tpu_custom_call.1} parent=35 // pred_region
          %s551 = ssub.s32 16, 16
          %552 = vsyncadd [#allocation12], %s551
          %s554 = sshll.u32 [#allocation13], 4
          %s555 = int_to_ptr.vmem [resolvable:$true] %s554
          %557 = dma.vmem_to_hbm [thread:$0]  %s555, 16, %s6, [#allocation12]
        $region72: #{tpu_custom_call.1} parent=35 // pred_fallthru
          _
        // Predicated region
        $region73: #{tpu_custom_call.1} parent=35 // pred_check
          %p558 = pneg %p139
        $region74: #{tpu_custom_call.1} parent=35 // pred_check_branch
          %560 = sbr.rel (%p558) target = $region76
        $region75: #{tpu_custom_call.1} parent=35 // pred_region
          %561 = dma.done [#allocation4], 16
        $region76: #{tpu_custom_call.1} parent=35 // pred_fallthru
          _
        // Predicated region
        $region77: #{tpu_custom_call.1} parent=35 // pred_check
          %p562 = pneg %p160
        $region78: #{tpu_custom_call.1} parent=35 // pred_check_branch
          %564 = sbr.rel (%p562) target = $region80
        $region79: #{tpu_custom_call.1} parent=35 // pred_region
          %565 = dma.done [#allocation12], 16
        $region80: #{tpu_custom_call.1} parent=35 // pred_fallthru
          _
        // Predicated region
        $region81: #{tpu_custom_call.1} parent=35 // pred_check
          %p566 = pneg %p181
        $region82: #{tpu_custom_call.1} parent=35 // pred_check_branch
          %568 = sbr.rel (%p566) target = $region84
        $region83: #{tpu_custom_call.1} parent=35 // pred_region
          %569 = dma.done [#allocation12], 16
        $region84: #{tpu_custom_call.1} parent=35 // pred_fallthru
          _
      $region36: #{tpu_custom_call.1} parent=5 // pred_fallthru
        _
      %p570 = scmp.le.s32.totalorder 2, %s22
      // Predicated region
      $region85: #{tpu_custom_call.1} parent=5 // pred_check
        %p571 = pneg %p570
      $region86: #{tpu_custom_call.1} parent=5 // pred_check_branch
        %573 = sbr.rel (%p571) target = $region88
      $region87: #{tpu_custom_call.1} parent=5 // pred_region
        %s574 = ssub.s32 %s22, 2
      $region88: #{tpu_custom_call.1} parent=5 // pred_fallthru
        _
    $region6: #{tpu_custom_call.1} parent=1 // loop_footer
      %s26 = sadd.s32 1, %s22
    $region7: #{tpu_custom_call.1} parent=1 // loop_footer_branch
      %21 = sbr.rel target = $region3
    $region8: #{tpu_custom_call.1} parent=1 // loop_exit
      _
    %575 = vsyncpa [#allocation3], 1
    %s576 = scalar_lea.sflag [#allocation3], 1
    %577 = vsyncpa %s576, 1
    %578 = vsyncpa [#allocation8], 1
    %s579 = scalar_lea.sflag [#allocation8], 1
    %580 = vsyncpa %s579, 1
    %581 = vsyncpa [#allocation4], 1
    %s582 = scalar_lea.sflag [#allocation4], 1
    %583 = vsyncpa %s582, 1
    %584 = vsyncpa [#allocation12], 1
    %585 = vsyncpa [#allocation5], 1
    %s586 = scalar_lea.sflag [#allocation5], 1
    %587 = vsyncpa %s586, 1

</llo_original>
